<compile_context>
chip_gen: v7x
topology: tpu7x:2x2x1
jax: 0.10.0
libtpu: 0.0.40
codegen_flags: <defaults>
</compile_context>

<pallas_src>
import functools
import math

import jax
import jax.numpy as jnp
from jax.experimental import pallas as pl
from jax.experimental.pallas import tpu as pltpu

LEAKY_ALPHA = 0.2
NEG_BIG = -9e15          # same masking constant as the PyTorch reference
TILE_Q = 128             # raise (256/512) on v6e; keep footprint < ~48 MiB on v7x
TILE_K = 128


def _round_up(v, m):
    return (v + m - 1) // m * m


# --------------------------------------------------------------------------- #
# Kernels
# --------------------------------------------------------------------------- #
def _input_proj_kernel(x_ref, w_in_ref, b_in_ref, w0_ref, a_src_ref, a_dst_ref,
                       wh_ref, esrc_ref, edst_ref):
    """h = relu(x @ W_in + b); Wh0 = h @ W0; per-node attention scores."""
    # TODO(synk): nn.Dropout layers are identity in eval mode and are omitted.
    h = jnp.dot(x_ref[...].astype(jnp.bfloat16), w_in_ref[...],
                preferred_element_type=jnp.float32)
    h = jnp.maximum(h + b_in_ref[...], 0.0)
    wh = jnp.dot(h.astype(jnp.bfloat16), w0_ref[...],
                 preferred_element_type=jnp.float32)
    wh_ref[...] = wh.astype(wh_ref.dtype)
    # e_src[i] = Wh[i]·a_src  (column [TQ,1]);  e_dst[j] = Wh[j]·a_dst as a
    # lane-oriented row [1,TQ] (no [N,1] -> [1,N] XLU transpose later).
    esrc_ref[...] = jnp.sum(wh * a_src_ref[...], axis=1, keepdims=True)
    edst_ref[...] = jax.lax.dot_general(a_dst_ref[...], wh,
                                        (((1,), (1,)), ((), ())),
                                        preferred_element_type=jnp.float32)


def _proj_kernel(h_ref, w_ref, a_src_ref, a_dst_ref, wh_ref, esrc_ref, edst_ref):
    """Wh = h @ W  plus per-node attention scores (second GAT layer)."""
    wh = jnp.dot(h_ref[...].astype(jnp.bfloat16), w_ref[...],
                 preferred_element_type=jnp.float32)
    wh_ref[...] = wh.astype(wh_ref.dtype)
    esrc_ref[...] = jnp.sum(wh * a_src_ref[...], axis=1, keepdims=True)
    edst_ref[...] = jax.lax.dot_general(a_dst_ref[...], wh,
                                        (((1,), (1,)), ((), ())),
                                        preferred_element_type=jnp.float32)


def _gat_attn_kernel(esrc_ref, edst_ref, adj_ref, wh_v_ref, out_ref,
                     m_sc, l_sc, acc_sc, *, apply_elu):
    """One (q_tile, kv_tile) step of the masked GAT softmax-aggregation."""
    kv = pl.program_id(1)

    @pl.when(kv == 0)
    def _init():
        m_sc[...] = jnp.full(m_sc.shape, -jnp.inf, m_sc.dtype)
        l_sc[...] = jnp.zeros(l_sc.shape, l_sc.dtype)
        acc_sc[...] = jnp.zeros(acc_sc.shape, acc_sc.dtype)

    # e[i, j] = leakyrelu(Wh[i]·a_src + Wh[j]·a_dst); mask = where(adj > 0, e, -9e15)
    s = esrc_ref[...] + edst_ref[...]                      # [TQ,1] + [1,TK] -> [TQ,TK]
    s = jnp.where(s > 0, s, LEAKY_ALPHA * s)               # LeakyReLU(0.2)
    s = jnp.where(adj_ref[...] > 0, s, NEG_BIG)            # exact reference masking

    # online softmax update (f32)
    m_prev = m_sc[...]
    m_new = jnp.maximum(m_prev, jnp.max(s, axis=1, keepdims=True))
    alpha = jnp.exp(m_prev - m_new)
    p = jnp.exp(s - m_new)
    l_sc[...] = alpha * l_sc[...] + jnp.sum(p, axis=1, keepdims=True)
    acc_sc[...] = alpha * acc_sc[...] + jnp.dot(
        p.astype(jnp.bfloat16), wh_v_ref[...], preferred_element_type=jnp.float32)
    m_sc[...] = m_new

    @pl.when(kv == pl.num_programs(1) - 1)
    def _finalize():
        h = acc_sc[...] * pl.reciprocal(l_sc[...], approx=True)
        if apply_elu:
            h = jnp.where(h > 0, h, jnp.exp(jnp.minimum(h, 0.0)) - 1.0)
        out_ref[...] = h.astype(out_ref.dtype)


# --------------------------------------------------------------------------- #
# pallas_call wrappers
# --------------------------------------------------------------------------- #
def _input_projection(x, w_in, b_in, w0, a_src, a_dst, tq):
    n, i_pad = x.shape
    h_pad = w0.shape[1]
    return pl.pallas_call(
        _input_proj_kernel,
        out_shape=(jax.ShapeDtypeStruct((n, h_pad), jnp.bfloat16),   # Wh (values)
                   jax.ShapeDtypeStruct((n, 1), jnp.float32),        # e_src column
                   jax.ShapeDtypeStruct((1, n), jnp.float32)),       # e_dst row
        grid=(n // tq,),
        in_specs=[
            pl.BlockSpec((tq, i_pad), lambda i: (i, 0)),
            pl.BlockSpec(w_in.shape, lambda i: (0, 0)),
            pl.BlockSpec(b_in.shape, lambda i: (0, 0)),
            pl.BlockSpec(w0.shape, lambda i: (0, 0)),
            pl.BlockSpec(a_src.shape, lambda i: (0, 0)),
            pl.BlockSpec(a_dst.shape, lambda i: (0, 0)),
        ],
        out_specs=(
            pl.BlockSpec((tq, h_pad), lambda i: (i, 0)),
            pl.BlockSpec((tq, 1), lambda i: (i, 0)),
            pl.BlockSpec((1, tq), lambda i: (0, i)),
        ),
        compiler_params=pltpu.CompilerParams(dimension_semantics=("parallel",)),
    )(x, w_in, b_in, w0, a_src, a_dst)


def _projection(h, w, a_src, a_dst, tq):
    n, _ = h.shape
    d_out = w.shape[1]
    return pl.pallas_call(
        _proj_kernel,
        out_shape=(jax.ShapeDtypeStruct((n, d_out), jnp.bfloat16),
                   jax.ShapeDtypeStruct((n, 1), jnp.float32),
                   jax.ShapeDtypeStruct((1, n), jnp.float32)),
        grid=(n // tq,),
        in_specs=[
            pl.BlockSpec((tq, h.shape[1]), lambda i: (i, 0)),
            pl.BlockSpec(w.shape, lambda i: (0, 0)),
            pl.BlockSpec(a_src.shape, lambda i: (0, 0)),
            pl.BlockSpec(a_dst.shape, lambda i: (0, 0)),
        ],
        out_specs=(
            pl.BlockSpec((tq, d_out), lambda i: (i, 0)),
            pl.BlockSpec((tq, 1), lambda i: (i, 0)),
            pl.BlockSpec((1, tq), lambda i: (0, i)),
        ),
        compiler_params=pltpu.CompilerParams(dimension_semantics=("parallel",)),
    )(h, w, a_src, a_dst)


def _gat_attention(wh, esrc, edst, adj, tq, tk, *, apply_elu):
    n, d = wh.shape
    kernel = functools.partial(_gat_attn_kernel, apply_elu=apply_elu)
    return pl.pallas_call(
        kernel,
        out_shape=jax.ShapeDtypeStruct((n, d), jnp.float32),
        grid=(n // tq, n // tk),
        in_specs=[
            pl.BlockSpec((tq, 1), lambda i, k: (i, 0)),    # e_src column tile
            pl.BlockSpec((1, tk), lambda i, k: (0, k)),    # e_dst row tile
            pl.BlockSpec((tq, tk), lambda i, k: (i, k)),   # adjacency tile (bf16)
            pl.BlockSpec((tk, d), lambda i, k: (k, 0)),    # Wh value rows (bf16)
        ],
        out_specs=pl.BlockSpec((tq, d), lambda i, k: (i, 0)),
        scratch_shapes=[
            pltpu.VMEM((tq, 1), jnp.float32),   # running max
            pltpu.VMEM((tq, 1), jnp.float32),   # running sum
            pltpu.VMEM((tq, d), jnp.float32),   # output accumulator
        ],
        compiler_params=pltpu.CompilerParams(
            dimension_semantics=("parallel", "arbitrary")),
    )(esrc, edst, adj, wh)


# --------------------------------------------------------------------------- #
# Full forward pass
# --------------------------------------------------------------------------- #
def message_passing_gnn(x, adj, params, *, tile_q=TILE_Q, tile_k=TILE_K):
    """MessagePassingGNN forward (eval mode). x:[N,in], adj:[N,N] -> [N,out]."""
    n, in_dim = x.shape
    hid = params["w0"].shape[1]
    out_dim = params["w1"].shape[1]

    n_pad = _round_up(n, math.lcm(tile_q, tile_k))
    i_pad = _round_up(in_dim, 128)
    h_pad = _round_up(hid, 128)
    o_pad = _round_up(out_dim, 128)

    f32, bf16 = jnp.float32, jnp.bfloat16
    xp = jnp.pad(x.astype(f32), ((0, n_pad - n), (0, i_pad - in_dim)))
    adjp = jnp.pad(adj.astype(f32), ((0, n_pad - n), (0, n_pad - n))).astype(bf16)

    w_in = jnp.pad(params["w_in"], ((0, i_pad - in_dim), (0, h_pad - hid))).astype(bf16)
    b_in = jnp.pad(params["b_in"], ((0, 0), (0, h_pad - hid)))
    w0 = jnp.pad(params["w0"], ((0, h_pad - hid), (0, h_pad - hid))).astype(bf16)
    a0_src = jnp.pad(params["a0_src"], ((0, 0), (0, h_pad - hid)))
    a0_dst = jnp.pad(params["a0_dst"], ((0, 0), (0, h_pad - hid)))
    w1 = jnp.pad(params["w1"], ((0, h_pad - hid), (0, o_pad - out_dim))).astype(bf16)
    a1_src = jnp.pad(params["a1_src"], ((0, 0), (0, o_pad - out_dim)))
    a1_dst = jnp.pad(params["a1_dst"], ((0, 0), (0, o_pad - out_dim)))

    # input projection + ReLU fused with layer-0 linear transform and score precompute
    wh0, es0, ed0 = _input_projection(xp, w_in, b_in, w0, a0_src, a0_dst, tile_q)
    # GAT layer 0 (concat=True -> ELU)
    h1 = _gat_attention(wh0, es0, ed0, adjp, tile_q, tile_k, apply_elu=True)
    # GAT layer 1 linear transform + score precompute
    wh1, es1, ed1 = _projection(h1, w1, a1_src, a1_dst, tile_q)
    # GAT layer 1 (concat=False -> no activation)
    out = _gat_attention(wh1, es1, ed1, adjp, tile_q, tile_k, apply_elu=False)

    return out[:n, :out_dim]


def init_params(key, input_dim, hidden_dim, output_dim):
    """Deterministic synthetic parameters (xavier-uniform-ish), stored [in, out]."""
    ks = jax.random.split(key, 6)

    def xavier(k, shape):
        bound = jnp.sqrt(6.0 / (shape[0] + shape[1]))
        return jax.random.uniform(k, shape, jnp.float32, -bound, bound)

    # attention vector a is a single [1, 2*out] row (= nn.Linear(2*out, 1) weight),
    # split into source / destination halves, both stored as rows [1, out].
    a0 = xavier(ks[3], (1, 2 * hidden_dim))
    a1 = xavier(ks[5], (1, 2 * output_dim))
    return {
        "w_in": xavier(ks[0], (input_dim, hidden_dim)),
        "b_in": jax.random.uniform(ks[1], (1, hidden_dim), jnp.float32, -0.1, 0.1),
        "w0": xavier(ks[2], (hidden_dim, hidden_dim)),
        "a0_src": a0[:, :hidden_dim],
        "a0_dst": a0[:, hidden_dim:],
        "w1": xavier(ks[4], (hidden_dim, output_dim)),
        "a1_src": a1[:, :output_dim],
        "a1_dst": a1[:, output_dim:],
    }


if __name__ == "__main__":
    N, INPUT_DIM, HIDDEN_DIM, OUTPUT_DIM = 8, 16, 32, 8

    key = jax.random.PRNGKey(0)
    k_x, k_adj, k_p = jax.random.split(key, 3)

    x = jax.random.normal(k_x, (N, INPUT_DIM), jnp.float32)
    adj = (jax.random.uniform(k_adj, (N, N)) > 0.5).astype(jnp.float32)
    adj = jnp.maximum(adj, jnp.eye(N, dtype=jnp.float32))  # self-loops

    params = init_params(k_p, INPUT_DIM, HIDDEN_DIM, OUTPUT_DIM)

    out = message_passing_gnn(x, adj, params)
    jax.block_until_ready(out)
    assert out.shape == (N, OUTPUT_DIM)
    assert bool(jnp.all(jnp.isfinite(out)))
    print("KERNEL_OK")
</pallas_src>

<mosaic_0001>
module attributes {stable_mosaic.version = 11 : i64} {
  func.func @_input_proj_kernel(%arg0: i32, %arg1: memref<128x128xf32, #tpu.memory_space<vmem>>, %arg2: memref<128x128xbf16, #tpu.memory_space<vmem>>, %arg3: memref<1x128xf32, #tpu.memory_space<vmem>>, %arg4: memref<128x128xbf16, #tpu.memory_space<vmem>>, %arg5: memref<1x128xf32, #tpu.memory_space<vmem>>, %arg6: memref<1x128xf32, #tpu.memory_space<vmem>>, %arg7: memref<128x128xbf16, #tpu.memory_space<vmem>>, %arg8: memref<128x1xf32, #tpu.memory_space<vmem>>, %arg9: memref<1x128xf32, #tpu.memory_space<vmem>>) attributes {dimension_semantics = [#tpu.dimension_semantics<parallel>], iteration_bounds = array<i64: 1>, scalar_prefetch = 0 : i64, scratch_operands = 0 : i64, tpu.core_type = #tpu.core_type<tc>, window_params = [{transform_indices = @transform_0, window_bounds = array<i64: 128, 128>}, {pipeline_mode = #tpu.pipeline_mode<synchronous>, transform_indices = @transform_1, window_bounds = array<i64: 128, 128>}, {pipeline_mode = #tpu.pipeline_mode<synchronous>, transform_indices = @transform_2, window_bounds = array<i64: 1, 128>}, {pipeline_mode = #tpu.pipeline_mode<synchronous>, transform_indices = @transform_3, window_bounds = array<i64: 128, 128>}, {pipeline_mode = #tpu.pipeline_mode<synchronous>, transform_indices = @transform_4, window_bounds = array<i64: 1, 128>}, {pipeline_mode = #tpu.pipeline_mode<synchronous>, transform_indices = @transform_5, window_bounds = array<i64: 1, 128>}, {transform_indices = @transform_6, window_bounds = array<i64: 128, 128>}, {transform_indices = @transform_7, window_bounds = array<i64: 128, 1>}, {transform_indices = @transform_8, window_bounds = array<i64: 1, 128>}]} {
    %c0 = arith.constant 0 : index
    %c0_0 = arith.constant 0 : index
    %0 = vector.load %arg1[%c0, %c0_0] : memref<128x128xf32, #tpu.memory_space<vmem>>, vector<128x128xf32>
    %1 = arith.truncf %0 : vector<128x128xf32> to vector<128x128xbf16>
    %c0_1 = arith.constant 0 : index
    %c0_2 = arith.constant 0 : index
    %2 = vector.load %arg2[%c0_1, %c0_2] : memref<128x128xbf16, #tpu.memory_space<vmem>>, vector<128x128xbf16>
    %cst = arith.constant dense<0.000000e+00> : vector<128x128xf32>
    %3 = tpu.matmul %1, %2, %cst {dimension_numbers = #tpu.dot_dimension_numbers<[1], [0], [0], [1], [0, 0, 1, 1], [], []>} : vector<128x128xbf16>, vector<128x128xbf16>, vector<128x128xf32> -> vector<128x128xf32>
    %c0_3 = arith.constant 0 : index
    %c0_4 = arith.constant 0 : index
    %4 = vector.load %arg3[%c0_3, %c0_4] : memref<1x128xf32, #tpu.memory_space<vmem>>, vector<1x128xf32>
    %5 = vector.broadcast %4 : vector<1x128xf32> to vector<128x128xf32>
    %6 = arith.addf %3, %5 : vector<128x128xf32>
    %cst_5 = arith.constant 0.000000e+00 : f32
    %7 = vector.broadcast %cst_5 : f32 to vector<128x128xf32>
    %8 = arith.maximumf %6, %7 : vector<128x128xf32>
    %9 = arith.truncf %8 : vector<128x128xf32> to vector<128x128xbf16>
    %c0_6 = arith.constant 0 : index
    %c0_7 = arith.constant 0 : index
    %10 = vector.load %arg4[%c0_6, %c0_7] : memref<128x128xbf16, #tpu.memory_space<vmem>>, vector<128x128xbf16>
    %cst_8 = arith.constant dense<0.000000e+00> : vector<128x128xf32>
    %11 = tpu.matmul %9, %10, %cst_8 {dimension_numbers = #tpu.dot_dimension_numbers<[1], [0], [0], [1], [0, 0, 1, 1], [], []>} : vector<128x128xbf16>, vector<128x128xbf16>, vector<128x128xf32> -> vector<128x128xf32>
    %12 = arith.truncf %11 : vector<128x128xf32> to vector<128x128xbf16>
    %c0_9 = arith.constant 0 : index
    %c0_10 = arith.constant 0 : index
    %13 = vector.load %arg7[%c0_9, %c0_10] : memref<128x128xbf16, #tpu.memory_space<vmem>>, vector<128x128xbf16>
    tpu.vector_store %arg7[%c0_9, %c0_10], %12 {strides = array<i32>} : memref<128x128xbf16, #tpu.memory_space<vmem>>, vector<128x128xbf16>,
    %c0_11 = arith.constant 0 : index
    %c0_12 = arith.constant 0 : index
    %14 = vector.load %arg5[%c0_11, %c0_12] : memref<1x128xf32, #tpu.memory_space<vmem>>, vector<1x128xf32>
    %15 = vector.broadcast %14 : vector<1x128xf32> to vector<128x128xf32>
    %16 = arith.mulf %11, %15 : vector<128x128xf32>
    %cst_13 = arith.constant dense<0.000000e+00> : vector<128xf32>
    %17 = vector.multi_reduction <add>, %16, %cst_13 [1] : vector<128x128xf32> to vector<128xf32>
    %18 = vector.shape_cast %17 : vector<128xf32> to vector<128x1xf32>
    %c0_14 = arith.constant 0 : index
    %c0_15 = arith.constant 0 : index
    %19 = vector.load %arg8[%c0_14, %c0_15] : memref<128x1xf32, #tpu.memory_space<vmem>>, vector<128x1xf32>
    tpu.vector_store %arg8[%c0_14, %c0_15], %18 {strides = array<i32>} : memref<128x1xf32, #tpu.memory_space<vmem>>, vector<128x1xf32>,
    %c0_16 = arith.constant 0 : index
    %c0_17 = arith.constant 0 : index
    %20 = vector.load %arg6[%c0_16, %c0_17] : memref<1x128xf32, #tpu.memory_space<vmem>>, vector<1x128xf32>
    %cst_18 = arith.constant dense<0.000000e+00> : vector<1x128xf32>
    %21 = tpu.matmul %20, %11, %cst_18 {dimension_numbers = #tpu.dot_dimension_numbers<[1], [1], [0], [0], [0, 0, 1, 0], [], []>} : vector<1x128xf32>, vector<128x128xf32>, vector<1x128xf32> -> vector<1x128xf32>
    %c0_19 = arith.constant 0 : index
    %c0_20 = arith.constant 0 : index
    %22 = vector.load %arg9[%c0_19, %c0_20] : memref<1x128xf32, #tpu.memory_space<vmem>>, vector<1x128xf32>
    tpu.vector_store %arg9[%c0_19, %c0_20], %21 {strides = array<i32>} : memref<1x128xf32, #tpu.memory_space<vmem>>, vector<1x128xf32>,
    return
  }
  func.func @transform_0(%arg0: i32) -> (i32, i32) {
    %c0_i32 = arith.constant 0 : i32
    %c0_i32_0 = arith.constant 0 : i32
    return %arg0, %c0_i32 : i32, i32
  }
  func.func @transform_1(%arg0: i32) -> (i32, i32) {
    %c0_i32 = arith.constant 0 : i32
    %c0_i32_0 = arith.constant 0 : i32
    %c0_i32_1 = arith.constant 0 : i32
    return %c0_i32, %c0_i32_0 : i32, i32
  }
  func.func @transform_2(%arg0: i32) -> (i32, i32) {
    %c0_i32 = arith.constant 0 : i32
    %c0_i32_0 = arith.constant 0 : i32
    %c0_i32_1 = arith.constant 0 : i32
    return %c0_i32, %c0_i32_0 : i32, i32
  }
  func.func @transform_3(%arg0: i32) -> (i32, i32) {
    %c0_i32 = arith.constant 0 : i32
    %c0_i32_0 = arith.constant 0 : i32
    %c0_i32_1 = arith.constant 0 : i32
    return %c0_i32, %c0_i32_0 : i32, i32
  }
  func.func @transform_4(%arg0: i32) -> (i32, i32) {
    %c0_i32 = arith.constant 0 : i32
    %c0_i32_0 = arith.constant 0 : i32
    %c0_i32_1 = arith.constant 0 : i32
    return %c0_i32, %c0_i32_0 : i32, i32
  }
  func.func @transform_5(%arg0: i32) -> (i32, i32) {
    %c0_i32 = arith.constant 0 : i32
    %c0_i32_0 = arith.constant 0 : i32
    %c0_i32_1 = arith.constant 0 : i32
    return %c0_i32, %c0_i32_0 : i32, i32
  }
  func.func @transform_6(%arg0: i32) -> (i32, i32) {
    %c0_i32 = arith.constant 0 : i32
    %c0_i32_0 = arith.constant 0 : i32
    return %arg0, %c0_i32 : i32, i32
  }
  func.func @transform_7(%arg0: i32) -> (i32, i32) {
    %c0_i32 = arith.constant 0 : i32
    %c0_i32_0 = arith.constant 0 : i32
    return %arg0, %c0_i32 : i32, i32
  }
  func.func @transform_8(%arg0: i32) -> (i32, i32) {
    %c0_i32 = arith.constant 0 : i32
    %c0_i32_0 = arith.constant 0 : i32
    return %c0_i32, %arg0 : i32, i32
  }
}

</mosaic_0001>

<llo_original>
// kernel: tpu_custom_call.1
$region0: #{tpu_custom_call.1}
  #allocation0 [shape = 'u32[]', space=smem, size = 0x4, offset = 0x4, fixed_abs, tag = 'smem constant byte address 0x4 - core index']
  #allocation1 [shape = 'u32[144,128]{1,0:T(1,128)}', space=vmem, size = 0x12000, scoped, tag = 'internal scratch']
  %s0 = inlined_call_operand.hbm [shape: f32[128,128], index: 0, kind: input, shape index: {}]
  %s1 = inlined_call_operand.hbm [shape: bf16[128,128], index: 1, kind: input, shape index: {}]
  %s2 = inlined_call_operand.vmem [shape: f32[1,128], index: 2, kind: input, shape index: {}]
  %s3 = inlined_call_operand.hbm [shape: bf16[128,128], index: 3, kind: input, shape index: {}]
  %s4 = inlined_call_operand.vmem [shape: f32[1,128], index: 4, kind: input, shape index: {}]
  %s5 = inlined_call_operand.vmem [shape: f32[1,128], index: 5, kind: input, shape index: {}]
  %s6 = inlined_call_operand.hbm [shape: bf16[128,128], index: 6, kind: output, shape index: {0}]
  %s7 = inlined_call_operand.vmem [shape: f32[128,1], index: 7, kind: output, shape index: {1}]
  %s8 = inlined_call_operand.hbm [shape: f32[1,128], index: 8, kind: output, shape index: {2}]
  %9 = xla_tuple %s6, %s7, %s8
  %s10 = sld [smem:[#allocation0]]
  $region62: #{tpu_custom_call.1} parent=0
    _
  %s12 = ssub.s32 1, %s10
  %s13 = scalar_select 0, %s12, %s10
  $region1: #{tpu_custom_call.1} parent=0
    #allocation2 [shape = 'u8[65536]{0}', space=vmem, size = 0x10000, scoped, tag = 'input window, operand 0, single buffered']
    #allocation3 [shape = 's32[1]{0}', space=sflag, size = 0x4, scoped, tag = 'scoped memory for tpu_custom_call.1']
    #allocation4 [shape = 's32[1]{0}', space=sflag, size = 0x4, scoped, tag = 'scoped memory for tpu_custom_call.1']
    #allocation5 [shape = 'u8[32768]{0}', space=vmem, size = 0x8000, scoped, tag = 'input window, operand 1, single buffered']
    #allocation6 [shape = 's32[1]{0}', space=sflag, size = 0x4, scoped, tag = 'scoped memory for tpu_custom_call.1']
    #allocation7 [shape = 'u8[32768]{0}', space=vmem, size = 0x8000, scoped, tag = 'input window, operand 3, single buffered']
    #allocation8 [shape = 'u8[32768]{0}', space=vmem, size = 0x8000, scoped, tag = 'output window, operand 0, single buffered']
    #allocation9 [shape = 'u8[512]{0}', space=vmem, size = 0x400, scoped, tag = 'output window, operand 2, single buffered']
    #allocation10 [shape = 's32[1]{0}', space=sflag, size = 0x4, scoped, tag = 'scoped memory for tpu_custom_call.1']
    %14 = vsyncpa [#allocation3], 0
    %15 = vsyncpa [#allocation6], 0
    %16 = vsyncpa [#allocation4], 0
    %17 = vsyncpa [#allocation10], 0
    // Predicated region
    $region2: #{tpu_custom_call.1} parent=1 // pred_check
      _
    $region3: #{tpu_custom_call.1} parent=1 // pred_check_branch
      %19 = sbr.rel (0) target = $region5
    $region4: #{tpu_custom_call.1} parent=1 // pred_region
      %s21 = ssub.s32 2048, 2048
      %22 = vsyncadd [#allocation3], %s21
      %s23 = sshll.u32 [#allocation2], 4
      %s24 = int_to_ptr.vmem [resolvable:$true] %s23
      %29 = dma.hbm_to_vmem [thread:$0]  %s0, 2048, %s24, [#allocation3], 128, 128, 8
    $region5: #{tpu_custom_call.1} parent=1 // pred_fallthru
      _
    // Predicated region
    $region6: #{tpu_custom_call.1} parent=1 // pred_check
      _
    $region7: #{tpu_custom_call.1} parent=1 // pred_check_branch
      %31 = sbr.rel (0) target = $region9
    $region8: #{tpu_custom_call.1} parent=1 // pred_region
      %s33 = ssub.s32 1024, 1024
      %34 = vsyncadd [#allocation6], %s33
      %s35 = sshll.u32 [#allocation5], 4
      %s36 = int_to_ptr.vmem [resolvable:$true] %s35
      %41 = dma.hbm_to_vmem [thread:$0]  %s1, 1024, %s36, [#allocation6], 64, 64, 4
    $region9: #{tpu_custom_call.1} parent=1 // pred_fallthru
      _
    // Predicated region
    $region10: #{tpu_custom_call.1} parent=1 // pred_check
      _
    $region11: #{tpu_custom_call.1} parent=1 // pred_check_branch
      %43 = sbr.rel (0) target = $region13
    $region12: #{tpu_custom_call.1} parent=1 // pred_region
      _
    $region13: #{tpu_custom_call.1} parent=1 // pred_fallthru
      _
    // Predicated region
    $region14: #{tpu_custom_call.1} parent=1 // pred_check
      _
    $region15: #{tpu_custom_call.1} parent=1 // pred_check_branch
      %45 = sbr.rel (0) target = $region17
    $region16: #{tpu_custom_call.1} parent=1 // pred_region
      %s47 = ssub.s32 1024, 1024
      %48 = vsyncadd [#allocation6], %s47
      %s49 = sshll.u32 [#allocation7], 4
      %s50 = int_to_ptr.vmem [resolvable:$true] %s49
      %55 = dma.hbm_to_vmem [thread:$0]  %s3, 1024, %s50, [#allocation6], 64, 64, 4
    $region17: #{tpu_custom_call.1} parent=1 // pred_fallthru
      _
    // Predicated region
    $region18: #{tpu_custom_call.1} parent=1 // pred_check
      _
    $region19: #{tpu_custom_call.1} parent=1 // pred_check_branch
      %57 = sbr.rel (0) target = $region21
    $region20: #{tpu_custom_call.1} parent=1 // pred_region
      _
    $region21: #{tpu_custom_call.1} parent=1 // pred_fallthru
      _
    // Predicated region
    $region22: #{tpu_custom_call.1} parent=1 // pred_check
      _
    $region23: #{tpu_custom_call.1} parent=1 // pred_check_branch
      %59 = sbr.rel (0) target = $region25
    $region24: #{tpu_custom_call.1} parent=1 // pred_region
      _
    $region25: #{tpu_custom_call.1} parent=1 // pred_fallthru
      _
    // Predicated region
    $region26: #{tpu_custom_call.1} parent=1 // pred_check
      _
    $region27: #{tpu_custom_call.1} parent=1 // pred_check_branch
      %61 = sbr.rel (0) target = $region29
    $region28: #{tpu_custom_call.1} parent=1 // pred_region
      %62 = dma.done [#allocation3], 2048
    $region29: #{tpu_custom_call.1} parent=1 // pred_fallthru
      _
    // Predicated region
    $region30: #{tpu_custom_call.1} parent=1 // pred_check
      _
    $region31: #{tpu_custom_call.1} parent=1 // pred_check_branch
      %64 = sbr.rel (0) target = $region33
    $region32: #{tpu_custom_call.1} parent=1 // pred_region
      %65 = dma.done [#allocation6], 1024
    $region33: #{tpu_custom_call.1} parent=1 // pred_fallthru
      _
    // Predicated region
    $region34: #{tpu_custom_call.1} parent=1 // pred_check
      _
    $region35: #{tpu_custom_call.1} parent=1 // pred_check_branch
      %67 = sbr.rel (0) target = $region37
    $region36: #{tpu_custom_call.1} parent=1 // pred_region
      %68 = dma.done [#allocation6], 1024
    $region37: #{tpu_custom_call.1} parent=1 // pred_fallthru
      _
    %v70 = vld [vmem:[#allocation2] sm:$0xff]
    %v71 = vld [vmem:[#allocation2 + $0x8] sm:$0xff]
    %v72 = vld [vmem:[#allocation2 + $0x10] sm:$0xff]
    %v73 = vld [vmem:[#allocation2 + $0x18] sm:$0xff]
    %v74 = vld [vmem:[#allocation2 + $0x20] sm:$0xff]
    %v75 = vld [vmem:[#allocation2 + $0x28] sm:$0xff]
    %v76 = vld [vmem:[#allocation2 + $0x30] sm:$0xff]
    %v77 = vld [vmem:[#allocation2 + $0x38] sm:$0xff]
    %v78 = vld [vmem:[#allocation2 + $0x40] sm:$0xff]
    %v79 = vld [vmem:[#allocation2 + $0x48] sm:$0xff]
    %v80 = vld [vmem:[#allocation2 + $0x50] sm:$0xff]
    %v81 = vld [vmem:[#allocation2 + $0x58] sm:$0xff]
    %v82 = vld [vmem:[#allocation2 + $0x60] sm:$0xff]
    %v83 = vld [vmem:[#allocation2 + $0x68] sm:$0xff]
    %v84 = vld [vmem:[#allocation2 + $0x70] sm:$0xff]
    %v85 = vld [vmem:[#allocation2 + $0x78] sm:$0xff]
    %v86 = vpack.c.bf16 %v71, %v70
    %v87 = vpack.c.bf16 %v73, %v72
    %v88 = vpack.c.bf16 %v75, %v74
    %v89 = vpack.c.bf16 %v77, %v76
    %v90 = vpack.c.bf16 %v79, %v78
    %v91 = vpack.c.bf16 %v81, %v80
    %v92 = vpack.c.bf16 %v83, %v82
    %v93 = vpack.c.bf16 %v85, %v84
    %v94 = vld [vmem:[#allocation5] sm:$0xf]
    %v95 = vld [vmem:[#allocation5 + $0x4] sm:$0xf]
    %v96 = vld [vmem:[#allocation5 + $0x8] sm:$0xf]
    %v97 = vld [vmem:[#allocation5 + $0xc] sm:$0xf]
    %v98 = vld [vmem:[#allocation5 + $0x10] sm:$0xf]
    %v99 = vld [vmem:[#allocation5 + $0x14] sm:$0xf]
    %v100 = vld [vmem:[#allocation5 + $0x18] sm:$0xf]
    %v101 = vld [vmem:[#allocation5 + $0x1c] sm:$0xf]
    %v102 = vld [vmem:[#allocation5 + $0x20] sm:$0xf]
    %v103 = vld [vmem:[#allocation5 + $0x24] sm:$0xf]
    %v104 = vld [vmem:[#allocation5 + $0x28] sm:$0xf]
    %v105 = vld [vmem:[#allocation5 + $0x2c] sm:$0xf]
    %v106 = vld [vmem:[#allocation5 + $0x30] sm:$0xf]
    %v107 = vld [vmem:[#allocation5 + $0x34] sm:$0xf]
    %v108 = vld [vmem:[#allocation5 + $0x38] sm:$0xf]
    %v109 = vld [vmem:[#allocation5 + $0x3c] sm:$0xf]
    %v110 = vld [vmem:[%s2] sm:$0x1]
    %v112 = vlaneseq
    %v113 = vshrl.u32 %v112, 7
    %v114 = vsub.s32 0, %v113
    %v115 = vrot.slane %v110, %v114
    %v133 = vunpack.c.l.b16 %v94
    %v134 = vunpack.c.l.b16 %v95
    %v135 = vunpack.c.l.b16 %v96
    %v136 = vunpack.c.l.b16 %v97
    %v137 = vunpack.c.l.b16 %v98
    %v138 = vunpack.c.l.b16 %v99
    %v139 = vunpack.c.l.b16 %v100
    %v140 = vunpack.c.l.b16 %v101
    %v141 = vunpack.c.l.b16 %v102
    %v142 = vunpack.c.l.b16 %v103
    %v143 = vunpack.c.l.b16 %v104
    %v144 = vunpack.c.l.b16 %v105
    %v145 = vunpack.c.l.b16 %v106
    %v146 = vunpack.c.l.b16 %v107
    %v147 = vunpack.c.l.b16 %v108
    %v148 = vunpack.c.l.b16 %v109
    %v149 = vpack.c.b16 %v134, %v133
    %v150 = vpack.c.b16 %v136, %v135
    %v151 = vpack.c.b16 %v138, %v137
    %v152 = vpack.c.b16 %v140, %v139
    %v153 = vpack.c.b16 %v142, %v141
    %v154 = vpack.c.b16 %v144, %v143
    %v155 = vpack.c.b16 %v146, %v145
    %v156 = vpack.c.b16 %v148, %v147
    %165 = vmatprep.subr.bf16.mxu0 0
    %166 = vmatpush1.bf16.msra.mxu0 %v149
    %167 = vmatprep.subr.bf16.mxu0 0
    %168 = vmatpush1.bf16.msra.mxu0 %v150
    %169 = vmatprep.subr.bf16.mxu0 0
    %170 = vmatpush1.bf16.msra.mxu0 %v151
    %171 = vmatprep.subr.bf16.mxu0 0
    %172 = vmatpush1.bf16.msra.mxu0 %v152
    %173 = vmatprep.subr.bf16.mxu0 0
    %174 = vmatpush1.bf16.msra.mxu0 %v153
    %175 = vmatprep.subr.bf16.mxu0 0
    %176 = vmatpush1.bf16.msra.mxu0 %v154
    %177 = vmatprep.subr.bf16.mxu0 0
    %178 = vmatpush1.bf16.msra.mxu0 %v155
    %179 = vmatprep.subr.bf16.mxu0 0
    %180 = vmatpush1.bf16.msra.mxu0 %v156
    %181 = vmatprep.subr.bf16.mxu0 0
    %182 = vmatpush1.bf16.msra.mxu0 0
    %183 = vmatprep.subr.bf16.mxu0 0
    %184 = vmatpush1.bf16.msra.mxu0 0
    %185 = vmatprep.subr.bf16.mxu0 0
    %186 = vmatpush1.bf16.msra.mxu0 0
    %187 = vmatprep.subr.bf16.mxu0 0
    %188 = vmatpush1.bf16.msra.mxu0 0
    %189 = vmatprep.subr.bf16.mxu0 0
    %190 = vmatpush1.bf16.msra.mxu0 0
    %191 = vmatprep.subr.bf16.mxu0 0
    %192 = vmatpush1.bf16.msra.mxu0 0
    %193 = vmatprep.subr.bf16.mxu0 0
    %194 = vmatpush1.bf16.msra.mxu0 0
    %195 = vmatprep.subr.bf16.mxu0 0
    %196 = vmatpush1.bf16.msra.mxu0 0
    %197 = vmatprep.mubr.bf16.mxu0 0
    %198 = vmatmul.mubr.bf16.gmra.mrb[0].mxu0 %v86
    %v199 = vpop.f32.mrb[0].mxu0
    %v200 = vadd.f32 %v115, %v199
    %v201 = vpop.f32.mrb[0].mxu0
    %v202 = vpop.f32.mrb[0].mxu0
    %v203 = vadd.f32 %v115, %v202
    %v204 = vpop.f32.mrb[0].mxu0
    %205 = vmatprep.mubr.bf16.mxu0 0
    %206 = vmatmul.mubr.bf16.gmra.mrb[0].mxu0 %v87
    %v207 = vpop.f32.mrb[0].mxu0
    %v208 = vadd.f32 %v115, %v207
    %v209 = vpop.f32.mrb[0].mxu0
    %v210 = vpop.f32.mrb[0].mxu0
    %v211 = vadd.f32 %v115, %v210
    %v212 = vpop.f32.mrb[0].mxu0
    %213 = vmatprep.mubr.bf16.mxu0 0
    %214 = vmatmul.mubr.bf16.gmra.mrb[0].mxu0 %v88
    %v215 = vpop.f32.mrb[0].mxu0
    %v216 = vadd.f32 %v115, %v215
    %v217 = vpop.f32.mrb[0].mxu0
    %v218 = vpop.f32.mrb[0].mxu0
    %v219 = vadd.f32 %v115, %v218
    %v220 = vpop.f32.mrb[0].mxu0
    %221 = vmatprep.mubr.bf16.mxu0 0
    %222 = vmatmul.mubr.bf16.gmra.mrb[0].mxu0 %v89
    %v223 = vpop.f32.mrb[0].mxu0
    %v224 = vadd.f32 %v115, %v223
    %v225 = vpop.f32.mrb[0].mxu0
    %v226 = vpop.f32.mrb[0].mxu0
    %v227 = vadd.f32 %v115, %v226
    %v228 = vpop.f32.mrb[0].mxu0
    %229 = vmatprep.mubr.bf16.mxu0 0
    %230 = vmatmul.mubr.bf16.gmra.mrb[0].mxu0 %v90
    %v231 = vpop.f32.mrb[0].mxu0
    %v232 = vadd.f32 %v115, %v231
    %v233 = vpop.f32.mrb[0].mxu0
    %v234 = vpop.f32.mrb[0].mxu0
    %v235 = vadd.f32 %v115, %v234
    %v236 = vpop.f32.mrb[0].mxu0
    %237 = vmatprep.mubr.bf16.mxu0 0
    %238 = vmatmul.mubr.bf16.gmra.mrb[0].mxu0 %v91
    %v239 = vpop.f32.mrb[0].mxu0
    %v240 = vadd.f32 %v115, %v239
    %v241 = vpop.f32.mrb[0].mxu0
    %v242 = vpop.f32.mrb[0].mxu0
    %v243 = vadd.f32 %v115, %v242
    %v244 = vpop.f32.mrb[0].mxu0
    %245 = vmatprep.mubr.bf16.mxu0 0
    %246 = vmatmul.mubr.bf16.gmra.mrb[0].mxu0 %v92
    %v247 = vpop.f32.mrb[0].mxu0
    %v248 = vadd.f32 %v115, %v247
    %v249 = vpop.f32.mrb[0].mxu0
    %v250 = vpop.f32.mrb[0].mxu0
    %v251 = vadd.f32 %v115, %v250
    %v252 = vpop.f32.mrb[0].mxu0
    %253 = vmatprep.mubr.bf16.mxu0 0
    %254 = vmatmul.mubr.bf16.gmra.mrb[0].mxu0 %v93
    %v255 = vpop.f32.mrb[0].mxu0
    %v256 = vadd.f32 %v115, %v255
    %v257 = vpop.f32.mrb[0].mxu0
    %v258 = vpop.f32.mrb[0].mxu0
    %v259 = vadd.f32 %v115, %v258
    %v260 = vpop.f32.mrb[0].mxu0
    %261 = vdwg.mxu0
    %v262 = vmax.f32 %v200, 0.0
    %v263 = vmax.f32 %v203, 0.0
    %v264 = vmax.f32 %v208, 0.0
    %v265 = vmax.f32 %v211, 0.0
    %v266 = vmax.f32 %v216, 0.0
    %v267 = vmax.f32 %v219, 0.0
    %v268 = vmax.f32 %v224, 0.0
    %v269 = vmax.f32 %v227, 0.0
    %v270 = vmax.f32 %v232, 0.0
    %v271 = vmax.f32 %v235, 0.0
    %v272 = vmax.f32 %v240, 0.0
    %v273 = vmax.f32 %v243, 0.0
    %v274 = vmax.f32 %v248, 0.0
    %v275 = vmax.f32 %v251, 0.0
    %v276 = vmax.f32 %v256, 0.0
    %v277 = vmax.f32 %v259, 0.0
    %v278 = vpack.c.bf16 %v263, %v262
    %v279 = vpack.c.bf16 %v265, %v264
    %v280 = vpack.c.bf16 %v267, %v266
    %v281 = vpack.c.bf16 %v269, %v268
    %v282 = vpack.c.bf16 %v271, %v270
    %v283 = vpack.c.bf16 %v273, %v272
    %v284 = vpack.c.bf16 %v275, %v274
    %v285 = vpack.c.bf16 %v277, %v276
    %v286 = vld [vmem:[#allocation7] sm:$0xf]
    %v287 = vld [vmem:[#allocation7 + $0x4] sm:$0xf]
    %v288 = vld [vmem:[#allocation7 + $0x8] sm:$0xf]
    %v289 = vld [vmem:[#allocation7 + $0xc] sm:$0xf]
    %v290 = vld [vmem:[#allocation7 + $0x10] sm:$0xf]
    %v291 = vld [vmem:[#allocation7 + $0x14] sm:$0xf]
    %v292 = vld [vmem:[#allocation7 + $0x18] sm:$0xf]
    %v293 = vld [vmem:[#allocation7 + $0x1c] sm:$0xf]
    %v294 = vld [vmem:[#allocation7 + $0x20] sm:$0xf]
    %v295 = vld [vmem:[#allocation7 + $0x24] sm:$0xf]
    %v296 = vld [vmem:[#allocation7 + $0x28] sm:$0xf]
    %v297 = vld [vmem:[#allocation7 + $0x2c] sm:$0xf]
    %v298 = vld [vmem:[#allocation7 + $0x30] sm:$0xf]
    %v299 = vld [vmem:[#allocation7 + $0x34] sm:$0xf]
    %v300 = vld [vmem:[#allocation7 + $0x38] sm:$0xf]
    %v301 = vld [vmem:[#allocation7 + $0x3c] sm:$0xf]
    %v318 = vunpack.c.l.b16 %v286
    %v319 = vunpack.c.l.b16 %v287
    %v320 = vunpack.c.l.b16 %v288
    %v321 = vunpack.c.l.b16 %v289
    %v322 = vunpack.c.l.b16 %v290
    %v323 = vunpack.c.l.b16 %v291
    %v324 = vunpack.c.l.b16 %v292
    %v325 = vunpack.c.l.b16 %v293
    %v326 = vunpack.c.l.b16 %v294
    %v327 = vunpack.c.l.b16 %v295
    %v328 = vunpack.c.l.b16 %v296
    %v329 = vunpack.c.l.b16 %v297
    %v330 = vunpack.c.l.b16 %v298
    %v331 = vunpack.c.l.b16 %v299
    %v332 = vunpack.c.l.b16 %v300
    %v333 = vunpack.c.l.b16 %v301
    %v334 = vpack.c.b16 %v319, %v318
    %v335 = vpack.c.b16 %v321, %v320
    %v336 = vpack.c.b16 %v323, %v322
    %v337 = vpack.c.b16 %v325, %v324
    %v338 = vpack.c.b16 %v327, %v326
    %v339 = vpack.c.b16 %v329, %v328
    %v340 = vpack.c.b16 %v331, %v330
    %v341 = vpack.c.b16 %v333, %v332
    %350 = vmatprep.subr.bf16.mxu0 0
    %351 = vmatpush1.bf16.msra.mxu0 %v334
    %352 = vmatprep.subr.bf16.mxu0 0
    %353 = vmatpush1.bf16.msra.mxu0 %v335
    %354 = vmatprep.subr.bf16.mxu0 0
    %355 = vmatpush1.bf16.msra.mxu0 %v336
    %356 = vmatprep.subr.bf16.mxu0 0
    %357 = vmatpush1.bf16.msra.mxu0 %v337
    %358 = vmatprep.subr.bf16.mxu0 0
    %359 = vmatpush1.bf16.msra.mxu0 %v338
    %360 = vmatprep.subr.bf16.mxu0 0
    %361 = vmatpush1.bf16.msra.mxu0 %v339
    %362 = vmatprep.subr.bf16.mxu0 0
    %363 = vmatpush1.bf16.msra.mxu0 %v340
    %364 = vmatprep.subr.bf16.mxu0 0
    %365 = vmatpush1.bf16.msra.mxu0 %v341
    %366 = vmatprep.subr.bf16.mxu0 0
    %367 = vmatpush1.bf16.msra.mxu0 0
    %368 = vmatprep.subr.bf16.mxu0 0
    %369 = vmatpush1.bf16.msra.mxu0 0
    %370 = vmatprep.subr.bf16.mxu0 0
    %371 = vmatpush1.bf16.msra.mxu0 0
    %372 = vmatprep.subr.bf16.mxu0 0
    %373 = vmatpush1.bf16.msra.mxu0 0
    %374 = vmatprep.subr.bf16.mxu0 0
    %375 = vmatpush1.bf16.msra.mxu0 0
    %376 = vmatprep.subr.bf16.mxu0 0
    %377 = vmatpush1.bf16.msra.mxu0 0
    %378 = vmatprep.subr.bf16.mxu0 0
    %379 = vmatpush1.bf16.msra.mxu0 0
    %380 = vmatprep.subr.bf16.mxu0 0
    %381 = vmatpush1.bf16.msra.mxu0 0
    %382 = vmatprep.mubr.bf16.mxu0 0
    %383 = vmatmul.mubr.bf16.gmra.mrb[0].mxu0 %v278
    %v384 = vpop.f32.mrb[0].mxu0
    %v385 = vadd.f32 0.0, %v384
    %v386 = vpop.f32.mrb[0].mxu0
    %v387 = vpop.f32.mrb[0].mxu0
    %v388 = vadd.f32 0.0, %v387
    %v389 = vpop.f32.mrb[0].mxu0
    %390 = vmatprep.mubr.bf16.mxu0 0
    %391 = vmatmul.mubr.bf16.gmra.mrb[0].mxu0 %v279
    %v392 = vpop.f32.mrb[0].mxu0
    %v393 = vadd.f32 0.0, %v392
    %v394 = vpop.f32.mrb[0].mxu0
    %v395 = vpop.f32.mrb[0].mxu0
    %v396 = vadd.f32 0.0, %v395
    %v397 = vpop.f32.mrb[0].mxu0
    %398 = vmatprep.mubr.bf16.mxu0 0
    %399 = vmatmul.mubr.bf16.gmra.mrb[0].mxu0 %v280
    %v400 = vpop.f32.mrb[0].mxu0
    %v401 = vadd.f32 0.0, %v400
    %v402 = vpop.f32.mrb[0].mxu0
    %v403 = vpop.f32.mrb[0].mxu0
    %v404 = vadd.f32 0.0, %v403
    %v405 = vpop.f32.mrb[0].mxu0
    %406 = vmatprep.mubr.bf16.mxu0 0
    %407 = vmatmul.mubr.bf16.gmra.mrb[0].mxu0 %v281
    %v408 = vpop.f32.mrb[0].mxu0
    %v409 = vadd.f32 0.0, %v408
    %v410 = vpop.f32.mrb[0].mxu0
    %v411 = vpop.f32.mrb[0].mxu0
    %v412 = vadd.f32 0.0, %v411
    %v413 = vpop.f32.mrb[0].mxu0
    %414 = vmatprep.mubr.bf16.mxu0 0
    %415 = vmatmul.mubr.bf16.gmra.mrb[0].mxu0 %v282
    %v416 = vpop.f32.mrb[0].mxu0
    %v417 = vadd.f32 0.0, %v416
    %v418 = vpop.f32.mrb[0].mxu0
    %v419 = vpop.f32.mrb[0].mxu0
    %v420 = vadd.f32 0.0, %v419
    %v421 = vpop.f32.mrb[0].mxu0
    %422 = vmatprep.mubr.bf16.mxu0 0
    %423 = vmatmul.mubr.bf16.gmra.mrb[0].mxu0 %v283
    %v424 = vpop.f32.mrb[0].mxu0
    %v425 = vadd.f32 0.0, %v424
    %v426 = vpop.f32.mrb[0].mxu0
    %v427 = vpop.f32.mrb[0].mxu0
    %v428 = vadd.f32 0.0, %v427
    %v429 = vpop.f32.mrb[0].mxu0
    %430 = vmatprep.mubr.bf16.mxu0 0
    %431 = vmatmul.mubr.bf16.gmra.mrb[0].mxu0 %v284
    %v432 = vpop.f32.mrb[0].mxu0
    %v433 = vadd.f32 0.0, %v432
    %v434 = vpop.f32.mrb[0].mxu0
    %v435 = vpop.f32.mrb[0].mxu0
    %v436 = vadd.f32 0.0, %v435
    %v437 = vpop.f32.mrb[0].mxu0
    %438 = vmatprep.mubr.bf16.mxu0 0
    %439 = vmatmul.mubr.bf16.gmra.mrb[0].mxu0 %v285
    %v440 = vpop.f32.mrb[0].mxu0
    %v441 = vadd.f32 0.0, %v440
    %v442 = vpop.f32.mrb[0].mxu0
    %v443 = vpop.f32.mrb[0].mxu0
    %v444 = vadd.f32 0.0, %v443
    %v445 = vpop.f32.mrb[0].mxu0
    %446 = vdwg.mxu0
    %v447 = vpack.c.bf16 %v388, %v385
    %v448 = vpack.c.bf16 %v396, %v393
    %v449 = vpack.c.bf16 %v404, %v401
    %v450 = vpack.c.bf16 %v412, %v409
    %v451 = vpack.c.bf16 %v420, %v417
    %v452 = vpack.c.bf16 %v428, %v425
    %v453 = vpack.c.bf16 %v436, %v433
    %v454 = vpack.c.bf16 %v444, %v441
    %v463 = vunpack.c.l.b16 %v447
    %v464 = vunpack.c.h.b16 %v447
    %v465 = vunpack.c.l.b16 %v448
    %v466 = vunpack.c.h.b16 %v448
    %v467 = vunpack.c.l.b16 %v449
    %v468 = vunpack.c.h.b16 %v449
    %v469 = vunpack.c.l.b16 %v450
    %v470 = vunpack.c.h.b16 %v450
    %v471 = vunpack.c.l.b16 %v451
    %v472 = vunpack.c.h.b16 %v451
    %v473 = vunpack.c.l.b16 %v452
    %v474 = vunpack.c.h.b16 %v452
    %v475 = vunpack.c.l.b16 %v453
    %v476 = vunpack.c.h.b16 %v453
    %v477 = vunpack.c.l.b16 %v454
    %v478 = vunpack.c.h.b16 %v454
    %v479 = vpack.c.b16 %v463, %v463
    %v480 = vpack.c.b16 %v464, %v464
    %v481 = vpack.c.b16 %v465, %v465
    %v482 = vpack.c.b16 %v466, %v466
    %v483 = vpack.c.b16 %v467, %v467
    %v484 = vpack.c.b16 %v468, %v468
    %v485 = vpack.c.b16 %v469, %v469
    %v486 = vpack.c.b16 %v470, %v470
    %v487 = vpack.c.b16 %v471, %v471
    %v488 = vpack.c.b16 %v472, %v472
    %v489 = vpack.c.b16 %v473, %v473
    %v490 = vpack.c.b16 %v474, %v474
    %v491 = vpack.c.b16 %v475, %v475
    %v492 = vpack.c.b16 %v476, %v476
    %v493 = vpack.c.b16 %v477, %v477
    %v494 = vpack.c.b16 %v478, %v478
    %511 = vst [vmem:[#allocation8] sm:$0xf] %v479
    %512 = vst [vmem:[#allocation8 + $0x4] sm:$0xf] %v480
    %513 = vst [vmem:[#allocation8 + $0x8] sm:$0xf] %v481
    %514 = vst [vmem:[#allocation8 + $0xc] sm:$0xf] %v482
    %515 = vst [vmem:[#allocation8 + $0x10] sm:$0xf] %v483
    %516 = vst [vmem:[#allocation8 + $0x14] sm:$0xf] %v484
    %517 = vst [vmem:[#allocation8 + $0x18] sm:$0xf] %v485
    %518 = vst [vmem:[#allocation8 + $0x1c] sm:$0xf] %v486
    %519 = vst [vmem:[#allocation8 + $0x20] sm:$0xf] %v487
    %520 = vst [vmem:[#allocation8 + $0x24] sm:$0xf] %v488
    %521 = vst [vmem:[#allocation8 + $0x28] sm:$0xf] %v489
    %522 = vst [vmem:[#allocation8 + $0x2c] sm:$0xf] %v490
    %523 = vst [vmem:[#allocation8 + $0x30] sm:$0xf] %v491
    %524 = vst [vmem:[#allocation8 + $0x34] sm:$0xf] %v492
    %525 = vst [vmem:[#allocation8 + $0x38] sm:$0xf] %v493
    %526 = vst [vmem:[#allocation8 + $0x3c] sm:$0xf] %v494
    %v527 = vld [vmem:[%s4] sm:$0x1]
    %v529 = vlaneseq
    %v530 = vshrl.u32 %v529, 7
    %v531 = vsub.s32 0, %v530
    %v532 = vrot.slane %v527, %v531
    %v534 = vmul.f32 %v385, %v532
    %v535 = vmul.f32 %v388, %v532
    %v536 = vmul.f32 %v393, %v532
    %v537 = vmul.f32 %v396, %v532
    %v538 = vmul.f32 %v401, %v532
    %v539 = vmul.f32 %v404, %v532
    %v540 = vmul.f32 %v409, %v532
    %v541 = vmul.f32 %v412, %v532
    %v542 = vmul.f32 %v417, %v532
    %v543 = vmul.f32 %v420, %v532
    %v544 = vmul.f32 %v425, %v532
    %v545 = vmul.f32 %v428, %v532
    %v546 = vmul.f32 %v433, %v532
    %v547 = vmul.f32 %v436, %v532
    %v548 = vmul.f32 %v441, %v532
    %v549 = vmul.f32 %v444, %v532
    %550 = vadd.xlane.f32.xlu0 %v534
    %v551 = vpop.xlane.xlu0 %550
    %552 = vadd.xlane.f32.xlu0 %v535
    %v553 = vpop.xlane.xlu0 %552
    %554 = vadd.xlane.f32.xlu0 %v536
    %v555 = vpop.xlane.xlu0 %554
    %556 = vadd.xlane.f32.xlu0 %v537
    %v557 = vpop.xlane.xlu0 %556
    %558 = vadd.xlane.f32.xlu0 %v538
    %v559 = vpop.xlane.xlu0 %558
    %560 = vadd.xlane.f32.xlu0 %v539
    %v561 = vpop.xlane.xlu0 %560
    %562 = vadd.xlane.f32.xlu0 %v540
    %v563 = vpop.xlane.xlu0 %562
    %564 = vadd.xlane.f32.xlu0 %v541
    %v565 = vpop.xlane.xlu0 %564
    %566 = vadd.xlane.f32.xlu0 %v542
    %v567 = vpop.xlane.xlu0 %566
    %568 = vadd.xlane.f32.xlu0 %v543
    %v569 = vpop.xlane.xlu0 %568
    %570 = vadd.xlane.f32.xlu0 %v544
    %v571 = vpop.xlane.xlu0 %570
    %572 = vadd.xlane.f32.xlu0 %v545
    %v573 = vpop.xlane.xlu0 %572
    %574 = vadd.xlane.f32.xlu0 %v546
    %v575 = vpop.xlane.xlu0 %574
    %576 = vadd.xlane.f32.xlu0 %v547
    %v577 = vpop.xlane.xlu0 %576
    %578 = vadd.xlane.f32.xlu0 %v548
    %v579 = vpop.xlane.xlu0 %578
    %580 = vadd.xlane.f32.xlu0 %v549
    %v581 = vpop.xlane.xlu0 %580
    %vm582 = vcmask 7168
    %583 = vst.msk [vmem:[%s7] sm:$0xff] %vm582, %v551
    %584 = vst.msk [vmem:[%s7 + $0x8] sm:$0xff] %vm582, %v553
    %585 = vst.msk [vmem:[%s7 + $0x10] sm:$0xff] %vm582, %v555
    %586 = vst.msk [vmem:[%s7 + $0x18] sm:$0xff] %vm582, %v557
    %587 = vst.msk [vmem:[%s7 + $0x20] sm:$0xff] %vm582, %v559
    %588 = vst.msk [vmem:[%s7 + $0x28] sm:$0xff] %vm582, %v561
    %589 = vst.msk [vmem:[%s7 + $0x30] sm:$0xff] %vm582, %v563
    %590 = vst.msk [vmem:[%s7 + $0x38] sm:$0xff] %vm582, %v565
    %591 = vst.msk [vmem:[%s7 + $0x40] sm:$0xff] %vm582, %v567
    %592 = vst.msk [vmem:[%s7 + $0x48] sm:$0xff] %vm582, %v569
    %593 = vst.msk [vmem:[%s7 + $0x50] sm:$0xff] %vm582, %v571
    %594 = vst.msk [vmem:[%s7 + $0x58] sm:$0xff] %vm582, %v573
    %595 = vst.msk [vmem:[%s7 + $0x60] sm:$0xff] %vm582, %v575
    %596 = vst.msk [vmem:[%s7 + $0x68] sm:$0xff] %vm582, %v577
    %597 = vst.msk [vmem:[%s7 + $0x70] sm:$0xff] %vm582, %v579
    %598 = vst.msk [vmem:[%s7 + $0x78] sm:$0xff] %vm582, %v581
    %v599 = vld [vmem:[%s5] sm:$0x1]
    %600 = vmatprep.subr.mxu0 0.0
    %601 = vmatpush1.xpose.msra.mxu0 %v385
    %602 = vmatprep.subr.mxu0 0.0
    %603 = vmatpush1.xpose.msra.mxu0 %v388
    %604 = vmatprep.subr.mxu0 0.0
    %605 = vmatpush1.xpose.msra.mxu0 %v393
    %606 = vmatprep.subr.mxu0 0.0
    %607 = vmatpush1.xpose.msra.mxu0 %v396
    %608 = vmatprep.subr.mxu0 0.0
    %609 = vmatpush1.xpose.msra.mxu0 %v401
    %610 = vmatprep.subr.mxu0 0.0
    %611 = vmatpush1.xpose.msra.mxu0 %v404
    %612 = vmatprep.subr.mxu0 0.0
    %613 = vmatpush1.xpose.msra.mxu0 %v409
    %614 = vmatprep.subr.mxu0 0.0
    %615 = vmatpush1.xpose.msra.mxu0 %v412
    %616 = vmatprep.subr.mxu0 0.0
    %617 = vmatpush1.xpose.msra.mxu0 %v417
    %618 = vmatprep.subr.mxu0 0.0
    %619 = vmatpush1.xpose.msra.mxu0 %v420
    %620 = vmatprep.subr.mxu0 0.0
    %621 = vmatpush1.xpose.msra.mxu0 %v425
    %622 = vmatprep.subr.mxu0 0.0
    %623 = vmatpush1.xpose.msra.mxu0 %v428
    %624 = vmatprep.subr.mxu0 0.0
    %625 = vmatpush1.xpose.msra.mxu0 %v433
    %626 = vmatprep.subr.mxu0 0.0
    %627 = vmatpush1.xpose.msra.mxu0 %v436
    %628 = vmatprep.subr.mxu0 0.0
    %629 = vmatpush1.xpose.msra.mxu0 %v441
    %630 = vmatprep.subr.mxu0 0.0
    %631 = vmatpush1.xpose.msra.mxu0 %v444
    %632 = vmatprep.subr.mxu0 0.0
    %633 = vmatpush1.xpose.msra.mxu0 0.0
    %634 = vmatprep.subr.mxu0 0.0
    %635 = vmatpush1.xpose.msra.mxu0 0.0
    %636 = vmatprep.subr.mxu0 0.0
    %637 = vmatpush1.xpose.msra.mxu0 0.0
    %638 = vmatprep.subr.mxu0 0.0
    %639 = vmatpush1.xpose.msra.mxu0 0.0
    %640 = vmatprep.subr.mxu0 0.0
    %641 = vmatpush1.xpose.msra.mxu0 0.0
    %642 = vmatprep.subr.mxu0 0.0
    %643 = vmatpush1.xpose.msra.mxu0 0.0
    %644 = vmatprep.subr.mxu0 0.0
    %645 = vmatpush1.xpose.msra.mxu0 0.0
    %646 = vmatprep.subr.mxu0 0.0
    %647 = vmatpush1.xpose.msra.mxu0 0.0
    %648 = vmatprep.subr.mxu0 0.0
    %649 = vmatpush1.xpose.msra.mxu0 0.0
    %650 = vmatprep.subr.mxu0 0.0
    %651 = vmatpush1.xpose.msra.mxu0 0.0
    %652 = vmatprep.subr.mxu0 0.0
    %653 = vmatpush1.xpose.msra.mxu0 0.0
    %654 = vmatprep.subr.mxu0 0.0
    %655 = vmatpush1.xpose.msra.mxu0 0.0
    %656 = vmatprep.subr.mxu0 0.0
    %657 = vmatpush1.xpose.msra.mxu0 0.0
    %658 = vmatprep.subr.mxu0 0.0
    %659 = vmatpush1.xpose.msra.mxu0 0.0
    %660 = vmatprep.subr.mxu0 0.0
    %661 = vmatpush1.xpose.msra.mxu0 0.0
    %662 = vmatprep.subr.mxu0 0.0
    %663 = vmatpush1.xpose.msra.mxu0 0.0
    %664 = vmatprep.mubr.f32.mxu0 0.0
    %665 = vmatmul.mubr.f32.gmra.mrb[0].mxu0 %v599
    %v666 = vpop.f32.mrb[0].mxu0
    %v667 = vadd.f32 0.0, %v666
    %v668 = vpop.f32.mrb[0].mxu0
    %669 = vdwg.mxu0
    %670 = vst [vmem:[#allocation9] sm:$0x1] %v667
    // Predicated region
    $region38: #{tpu_custom_call.1} parent=1 // pred_check
      _
    $region39: #{tpu_custom_call.1} parent=1 // pred_check_branch
      %672 = sbr.rel (0) target = $region41
    $region40: #{tpu_custom_call.1} parent=1 // pred_region
      %s674 = ssub.s32 1024, 1024
      %675 = vsyncadd [#allocation4], %s674
      %s676 = sshll.u32 [#allocation8], 4
      %s677 = int_to_ptr.vmem [resolvable:$true] %s676
      %682 = dma.vmem_to_hbm [thread:$0]  %s677, 1024, %s6, [#allocation4], 64, 64, 4
    $region41: #{tpu_custom_call.1} parent=1 // pred_fallthru
      _
    // Predicated region
    $region42: #{tpu_custom_call.1} parent=1 // pred_check
      _
    $region43: #{tpu_custom_call.1} parent=1 // pred_check_branch
      %684 = sbr.rel (0) target = $region45
    $region44: #{tpu_custom_call.1} parent=1 // pred_region
      _
    $region45: #{tpu_custom_call.1} parent=1 // pred_fallthru
      _
    // Predicated region
    $region46: #{tpu_custom_call.1} parent=1 // pred_check
      _
    $region47: #{tpu_custom_call.1} parent=1 // pred_check_branch
      %686 = sbr.rel (0) target = $region49
    $region48: #{tpu_custom_call.1} parent=1 // pred_region
      %s688 = ssub.s32 16, 16
      %689 = vsyncadd [#allocation10], %s688
      %s691 = sshll.u32 [#allocation9], 4
      %s692 = int_to_ptr.vmem [resolvable:$true] %s691
      %694 = dma.vmem_to_hbm [thread:$0]  %s692, 16, %s8, [#allocation10]
    $region49: #{tpu_custom_call.1} parent=1 // pred_fallthru
      _
    // Predicated region
    $region50: #{tpu_custom_call.1} parent=1 // pred_check
      _
    $region51: #{tpu_custom_call.1} parent=1 // pred_check_branch
      %696 = sbr.rel (0) target = $region53
    $region52: #{tpu_custom_call.1} parent=1 // pred_region
      %697 = dma.done [#allocation4], 1024
    $region53: #{tpu_custom_call.1} parent=1 // pred_fallthru
      _
    // Predicated region
    $region54: #{tpu_custom_call.1} parent=1 // pred_check
      _
    $region55: #{tpu_custom_call.1} parent=1 // pred_check_branch
      %699 = sbr.rel (0) target = $region57
    $region56: #{tpu_custom_call.1} parent=1 // pred_region
      _
    $region57: #{tpu_custom_call.1} parent=1 // pred_fallthru
      _
    // Predicated region
    $region58: #{tpu_custom_call.1} parent=1 // pred_check
      _
    $region59: #{tpu_custom_call.1} parent=1 // pred_check_branch
      %701 = sbr.rel (0) target = $region61
    $region60: #{tpu_custom_call.1} parent=1 // pred_region
      %702 = dma.done [#allocation10], 16
    $region61: #{tpu_custom_call.1} parent=1 // pred_fallthru
      _
    %703 = vsyncpa [#allocation3], 1
    %704 = vsyncpa [#allocation6], 1
    %705 = vsyncpa [#allocation4], 1
    %706 = vsyncpa [#allocation10], 1

</llo_original>
